<compile_context>
chip_gen: v6e
topology: v6e:2x2x1
jax: 0.10.0
libtpu: 0.0.40
codegen_flags: <defaults>
</compile_context>

<pallas_src>
import functools

import jax
import jax.numpy as jnp
from jax.experimental import pallas as pl
from jax.experimental.pallas import tpu as pltpu


def affine_kernel(x_ref, w_ref, b_ref, o_ref):
    # x: (Bm, 2), w: (2, Fout), b: (1, Fout), o: (Bm, Fout)
    x = x_ref[...]
    w = w_ref[...]
    # K=2 "matmul" as two broadcast FMAs on the VPU.
    out = x[:, 0:1] * w[0:1, :] + x[:, 1:2] * w[1:2, :] + b_ref[...]
    o_ref[...] = out.astype(o_ref.dtype)


def collapse_params(params):
    """Fold the four affine layers into one (W_eff, b_eff) pair (plain JAX, once)."""
    w1, b1 = params["w1"], params["b1"]
    w2, b2 = params["w2"], params["b2"]
    w3, b3 = params["w3"], params["b3"]
    w4, b4 = params["w4"], params["b4"]
    w_eff = w1 @ w2 @ w3 @ w4                          # (2, 2)
    b_eff = ((b1 @ w2 + b2) @ w3 + b3) @ w4 + b4       # (1, 2)
    return w_eff, b_eff


@functools.partial(jax.jit, static_argnames=("block_b",))
def net_forward(x, w_eff, b_eff, *, block_b=1024):
    """x: (B, 2) float32. Returns (B, 2) = x @ W_eff + b_eff."""
    B, f_in = x.shape
    f_out = w_eff.shape[1]
    # Whole-B block for small batches; 8-aligned row tile + grid for large B.
    bm = B if B <= block_b else block_b
    grid = (pl.cdiv(B, bm),)
    return pl.pallas_call(
        affine_kernel,
        out_shape=jax.ShapeDtypeStruct((B, f_out), x.dtype),
        grid=grid,
        in_specs=[
            pl.BlockSpec((bm, f_in), lambda i: (i, 0)),       # x rows, pipelined
            pl.BlockSpec((f_in, f_out), lambda i: (0, 0)),    # W_eff, resident
            pl.BlockSpec((1, f_out), lambda i: (0, 0)),       # b_eff, resident
        ],
        out_specs=pl.BlockSpec((bm, f_out), lambda i: (i, 0)),
        compiler_params=pltpu.CompilerParams(
            dimension_semantics=("parallel",)),               # megacore on v7x
    )(x, w_eff, b_eff)


def init_params(key):
    """Deterministic init mirroring PyTorch Linear defaults (stored transposed: (in, out))."""
    sizes = [(2, 64), (64, 64), (64, 64), (64, 2)]  # (in, out) per layer
    params = {}
    for i, (fin, fout) in enumerate(sizes, start=1):
        key, kw, kb = jax.random.split(key, 3)
        bound = 1.0 / jnp.sqrt(jnp.float32(fin))    # PyTorch default U(-1/sqrt(fin), +)
        params[f"w{i}"] = jax.random.uniform(
            kw, (fin, fout), jnp.float32, minval=-bound, maxval=bound)
        params[f"b{i}"] = jax.random.uniform(
            kb, (1, fout), jnp.float32, minval=-bound, maxval=bound)
    return params


if __name__ == "__main__":
    key = jax.random.PRNGKey(0)
    kp, kx = jax.random.split(key)
    params = init_params(kp)

    B = 8
    x = jax.random.normal(kx, (B, 2), jnp.float32)

    # Fold the 4 layers once (outside the kernel), then run the Pallas kernel.
    w_eff, b_eff = collapse_params(params)
    out = net_forward(x, w_eff, b_eff)
    jax.block_until_ready(out)

    # Reference: the original layered forward in plain JAX.
    ref = x
    for i in range(1, 5):
        ref = ref @ params[f"w{i}"] + params[f"b{i}"]

    assert out.shape == (B, 2)
    # Folding changes float association order slightly -> 1e-4 tolerance.
    assert jnp.allclose(out, ref, atol=1e-4, rtol=1e-4)

    print("KERNEL_OK")
</pallas_src>

<mosaic_0001>
module attributes {stable_mosaic.version = 11 : i64} {
  func.func @affine_kernel(%arg0: i32, %arg1: memref<8x2xf32, #tpu.memory_space<vmem>>, %arg2: memref<2x2xf32, #tpu.memory_space<vmem>>, %arg3: memref<1x2xf32, #tpu.memory_space<vmem>>, %arg4: memref<8x2xf32, #tpu.memory_space<vmem>>) attributes {dimension_semantics = [#tpu.dimension_semantics<parallel>], iteration_bounds = array<i64: 1>, scalar_prefetch = 0 : i64, scratch_operands = 0 : i64, tpu.core_type = #tpu.core_type<tc>, window_params = [{transform_indices = @transform_0, window_bounds = array<i64: 8, 2>}, {pipeline_mode = #tpu.pipeline_mode<synchronous>, transform_indices = @transform_1, window_bounds = array<i64: 2, 2>}, {pipeline_mode = #tpu.pipeline_mode<synchronous>, transform_indices = @transform_2, window_bounds = array<i64: 1, 2>}, {transform_indices = @transform_3, window_bounds = array<i64: 8, 2>}]} {
    %c0 = arith.constant 0 : index
    %c0_0 = arith.constant 0 : index
    %0 = vector.load %arg1[%c0, %c0_0] : memref<8x2xf32, #tpu.memory_space<vmem>>, vector<8x2xf32>
    %c0_1 = arith.constant 0 : index
    %c0_2 = arith.constant 0 : index
    %1 = vector.load %arg2[%c0_1, %c0_2] : memref<2x2xf32, #tpu.memory_space<vmem>>, vector<2x2xf32>
    %2 = vector.extract_strided_slice %0 {offsets = [0, 0], sizes = [8, 1], strides = [1, 1]} : vector<8x2xf32> to vector<8x1xf32>
    %3 = vector.extract_strided_slice %1 {offsets = [0, 0], sizes = [1, 2], strides = [1, 1]} : vector<2x2xf32> to vector<1x2xf32>
    %4 = vector.broadcast %2 : vector<8x1xf32> to vector<8x2xf32>
    %5 = vector.broadcast %3 : vector<1x2xf32> to vector<8x2xf32>
    %6 = arith.mulf %4, %5 : vector<8x2xf32>
    %7 = vector.extract_strided_slice %0 {offsets = [0, 1], sizes = [8, 1], strides = [1, 1]} : vector<8x2xf32> to vector<8x1xf32>
    %8 = vector.extract_strided_slice %1 {offsets = [1, 0], sizes = [1, 2], strides = [1, 1]} : vector<2x2xf32> to vector<1x2xf32>
    %9 = vector.broadcast %7 : vector<8x1xf32> to vector<8x2xf32>
    %10 = vector.broadcast %8 : vector<1x2xf32> to vector<8x2xf32>
    %11 = arith.mulf %9, %10 : vector<8x2xf32>
    %12 = arith.addf %6, %11 : vector<8x2xf32>
    %c0_3 = arith.constant 0 : index
    %c0_4 = arith.constant 0 : index
    %13 = vector.load %arg3[%c0_3, %c0_4] : memref<1x2xf32, #tpu.memory_space<vmem>>, vector<1x2xf32>
    %14 = vector.broadcast %13 : vector<1x2xf32> to vector<8x2xf32>
    %15 = arith.addf %12, %14 : vector<8x2xf32>
    %c0_5 = arith.constant 0 : index
    %c0_6 = arith.constant 0 : index
    %16 = vector.load %arg4[%c0_5, %c0_6] : memref<8x2xf32, #tpu.memory_space<vmem>>, vector<8x2xf32>
    tpu.vector_store %arg4[%c0_5, %c0_6], %15 {strides = array<i32>} : memref<8x2xf32, #tpu.memory_space<vmem>>, vector<8x2xf32>,
    return
  }
  func.func @transform_0(%arg0: i32) -> (i32, i32) {
    %c0_i32 = arith.constant 0 : i32
    %c0_i32_0 = arith.constant 0 : i32
    return %arg0, %c0_i32 : i32, i32
  }
  func.func @transform_1(%arg0: i32) -> (i32, i32) {
    %c0_i32 = arith.constant 0 : i32
    %c0_i32_0 = arith.constant 0 : i32
    %c0_i32_1 = arith.constant 0 : i32
    return %c0_i32, %c0_i32_0 : i32, i32
  }
  func.func @transform_2(%arg0: i32) -> (i32, i32) {
    %c0_i32 = arith.constant 0 : i32
    %c0_i32_0 = arith.constant 0 : i32
    %c0_i32_1 = arith.constant 0 : i32
    return %c0_i32, %c0_i32_0 : i32, i32
  }
  func.func @transform_3(%arg0: i32) -> (i32, i32) {
    %c0_i32 = arith.constant 0 : i32
    %c0_i32_0 = arith.constant 0 : i32
    return %arg0, %c0_i32 : i32, i32
  }
}

</mosaic_0001>

<llo_original>
// kernel: net_forward.1
$region0: #{net_forward.1}
  #allocation0 [shape = 'u32[]', space=smem, size = 0x4, offset = 0x4, fixed_abs, tag = 'smem constant byte address 0x4 - core index']
  #allocation1 [shape = 'u32[144,128]{1,0:T(1,128)}', space=vmem, size = 0x12000, scoped, tag = 'internal scratch']
  %s0 = inlined_call_operand.vmem [shape: f32[8,2], index: 0, kind: input, shape index: {}]
  %s1 = inlined_call_operand.vmem [shape: f32[2,2], index: 1, kind: input, shape index: {}]
  %s2 = inlined_call_operand.vmem [shape: f32[1,2], index: 2, kind: input, shape index: {}]
  %s3 = inlined_call_operand.vmem [shape: f32[8,2], index: 3, kind: output, shape index: {}]
  %s4 = sld [smem:[#allocation0]]
  $region22: #{net_forward.1} parent=0
    _
  %s6 = ssub.s32 1, %s4
  %s7 = scalar_select 0, %s6, %s4
  // Predicated region
  $region2: #{net_forward.1} parent=0 // pred_check
    _
  $region3: #{net_forward.1} parent=0 // pred_check_branch
    %9 = sbr.rel (0) target = $region5
  $region4: #{net_forward.1} parent=0 // pred_region
    _
  $region5: #{net_forward.1} parent=0 // pred_fallthru
    _
  // Predicated region
  $region6: #{net_forward.1} parent=0 // pred_check
    _
  $region7: #{net_forward.1} parent=0 // pred_check_branch
    %11 = sbr.rel (0) target = $region9
  $region8: #{net_forward.1} parent=0 // pred_region
    _
  $region9: #{net_forward.1} parent=0 // pred_fallthru
    _
  // Predicated region
  $region10: #{net_forward.1} parent=0 // pred_check
    _
  $region11: #{net_forward.1} parent=0 // pred_check_branch
    %13 = sbr.rel (0) target = $region13
  $region12: #{net_forward.1} parent=0 // pred_region
    _
  $region13: #{net_forward.1} parent=0 // pred_fallthru
    _
  %v14 = vld [vmem:[%s0] sm:$0xff]
  %v15 = vld [vmem:[%s1] sm:$0x3]
  %17 = vset.pattern.permute.xlu0 0
  %18 = vperm.xlu0 %17, %v14
  %v19 = vpop.permute.xlu0 %18
  %v21 = vlaneseq
  %v22 = vshrl.u32 %v21, 7
  %v23 = vsub.s32 0, %v22
  %v24 = vrot.slane %v15, %v23
  %v25 = vmul.f32 %v19, %v24
  %26 = vset.pattern.permute.xlu0 1
  %27 = vperm.xlu0 %26, %v14
  %v28 = vpop.permute.xlu0 %27
  %v30 = vlaneseq
  %v31 = vshrl.u32 %v30, 7
  %v32 = vsub.s32 1, %v31
  %v33 = vrot.slane %v15, %v32
  %v34 = vmul.f32 %v28, %v33
  %v35 = vadd.f32 %v25, %v34
  %v36 = vld [vmem:[%s2] sm:$0x1]
  %v38 = vlaneseq
  %v39 = vshrl.u32 %v38, 7
  %v40 = vsub.s32 0, %v39
  %v41 = vrot.slane %v36, %v40
  %v43 = vadd.f32 %v35, %v41
  %vm44 = vcmask 15360
  %45 = vst.msk [vmem:[%s3] sm:$0xff] %vm44, %v43
  // Predicated region
  $region14: #{net_forward.1} parent=0 // pred_check
    _
  $region15: #{net_forward.1} parent=0 // pred_check_branch
    %47 = sbr.rel (0) target = $region17
  $region16: #{net_forward.1} parent=0 // pred_region
    _
  $region17: #{net_forward.1} parent=0 // pred_fallthru
    _
  // Predicated region
  $region18: #{net_forward.1} parent=0 // pred_check
    _
  $region19: #{net_forward.1} parent=0 // pred_check_branch
    %49 = sbr.rel (0) target = $region21
  $region20: #{net_forward.1} parent=0 // pred_region
    _
  $region21: #{net_forward.1} parent=0 // pred_fallthru
    _

</llo_original>
